<compile_context>
chip_gen: v7x
topology: tpu7x:2x2x1
jax: 0.10.0
libtpu: 0.0.40
codegen_flags: <defaults>
</compile_context>

<pallas_src>
import functools

import jax
import jax.numpy as jnp
from jax.experimental import pallas as pl
from jax.experimental.pallas import tpu as pltpu

_LANE = 128
_SUBLANE = 8
_IN_DIM = 784
_HIDDEN = 100


def _round_up(x, m):
    return ((x + m - 1) // m) * m


# ----------------------------- kernel bodies ------------------------------ #

def _mlp_body(x_ref, w1_ref, b1_ref, w2_ref, b2_ref, out_ref, e_ref):
    # In-kernel cast of the f32 input tile to bf16 (cheap VALU work, hidden
    # under the DMA/MXU); fc1 on the MXU with f32 accumulation.
    x_bf16 = x_ref[...].astype(jnp.bfloat16)
    h = jnp.dot(x_bf16, w1_ref[...], preferred_element_type=jnp.float32)
    h = h + b1_ref[...]
    # Sigmoid: exp and approx reciprocal both land on the EUP slot.
    e = pl.reciprocal(1.0 + jnp.exp(-h), approx=True)
    if e_ref is not None:
        e_ref[...] = e.astype(e_ref.dtype)          # bf16 writeback
    # fc2 on the MXU (activations in bf16 for full-rate MXU feed).
    out = jnp.dot(e.astype(w2_ref.dtype), w2_ref[...],
                  preferred_element_type=jnp.float32)
    out_ref[...] = (out + b2_ref[...]).astype(out_ref.dtype)


def _mlp_kernel_fused(x_ref, w1_ref, b1_ref, w2_ref, b2_ref, out_ref, e_ref):
    _mlp_body(x_ref, w1_ref, b1_ref, w2_ref, b2_ref, out_ref, e_ref)


def _mlp_kernel_logits(x_ref, w1_ref, b1_ref, w2_ref, b2_ref, out_ref):
    _mlp_body(x_ref, w1_ref, b1_ref, w2_ref, b2_ref, out_ref, None)


# ------------------------------ param prep -------------------------------- #

def prepare_params(w1, b1, w2, b2):
    """One-time prep (outside the forward path): transpose PyTorch (out,in)
    weights to (in,out), zero-pad only the hidden/class lane dims to multiples
    of 128 (the 784 contraction dim stays unpadded), and cast weights to bf16.
    Biases stay f32 (added after the f32 accumulation)."""
    hidden = w1.shape[0]
    n_classes = w2.shape[0]
    hid_pad = _round_up(hidden, _LANE)        # 128
    cls_pad = _round_up(n_classes, _LANE)     # 128

    w1_t = jnp.zeros((_IN_DIM, hid_pad), jnp.float32).at[:, :hidden].set(w1.T)
    b1_r = jnp.zeros((1, hid_pad), jnp.float32).at[:, :hidden].set(b1)
    # Padded hidden rows of W2 are zero => sigmoid(0)=0.5 padding columns are inert.
    w2_t = jnp.zeros((hid_pad, cls_pad), jnp.float32).at[:hidden, :n_classes].set(w2.T)
    b2_r = jnp.zeros((1, cls_pad), jnp.float32).at[:, :n_classes].set(b2)

    return (w1_t.astype(jnp.bfloat16), b1_r,
            w2_t.astype(jnp.bfloat16), b2_r)


# -------------------------------- forward --------------------------------- #

@functools.partial(jax.jit,
                   static_argnames=("hidden", "n_classes", "use_linear", "block_b"))
def mnist_net_forward(x, w1_p, b1_p, w2_p, b2_p, *,
                      hidden=_HIDDEN, n_classes=10,
                      use_linear=False, block_b=1024):
    """x: (B, 1, 28, 28) float32 NCHW (flattened like torch.flatten(x, 1)).
    w1_p/b1_p/w2_p/b2_p: outputs of prepare_params."""
    B = x.shape[0]
    x_flat = x.reshape(B, -1)                 # (B, 784) f32 — no bf16 copy, no K pad

    in_dim = w1_p.shape[0]                    # 784
    hid_pad = w1_p.shape[1]                   # 128
    cls_pad = w2_p.shape[1]                   # 128

    # Batch tile: 1024 baseline (fits v5e's 16 MiB scoped VMEM double-buffered;
    # far under v6e/v7x 32 MiB). Cap so the grid has >=2 steps when possible so
    # the parallel batch axis shards across both v7x TensorCores.
    tb = min(block_b, max(_SUBLANE, _round_up(pl.cdiv(B, 2), _SUBLANE)))
    # Pad only to a sublane multiple, never to a tile multiple.
    b_pad = _round_up(B, _SUBLANE)
    if b_pad != B:
        x_flat = jnp.pad(x_flat, ((0, b_pad - B), (0, 0)))
    grid = (pl.cdiv(b_pad, tb),)              # partial last block is masked

    x_spec = pl.BlockSpec((tb, in_dim), lambda i: (i, 0))        # full-extent 784
    w1_spec = pl.BlockSpec((in_dim, hid_pad), lambda i: (0, 0))  # resident
    b1_spec = pl.BlockSpec((1, hid_pad), lambda i: (0, 0))
    w2_spec = pl.BlockSpec((hid_pad, cls_pad), lambda i: (0, 0))
    b2_spec = pl.BlockSpec((1, cls_pad), lambda i: (0, 0))
    out_spec = pl.BlockSpec((tb, cls_pad), lambda i: (i, 0))
    e_spec = pl.BlockSpec((tb, hid_pad), lambda i: (i, 0))

    flops = 2 * b_pad * (in_dim * hid_pad + hid_pad * cls_pad)
    bytes_accessed = (
        b_pad * in_dim * 4                    # f32 input read
        + w1_p.size * 2 + w2_p.size * 2       # bf16 weights
        + b1_p.size * 4 + b2_p.size * 4       # f32 biases
        + b_pad * cls_pad * 4                 # f32 logits out
        + (b_pad * hid_pad * 2 if use_linear else 0)   # bf16 e out
    )
    cost = pl.CostEstimate(flops=flops,
                           transcendentals=2 * b_pad * hid_pad,  # exp + vrcp
                           bytes_accessed=bytes_accessed)

    cparams = pltpu.CompilerParams(dimension_semantics=("parallel",))

    if use_linear:
        out_p, e_p = pl.pallas_call(
            _mlp_kernel_fused,
            out_shape=(jax.ShapeDtypeStruct((b_pad, cls_pad), jnp.float32),
                       jax.ShapeDtypeStruct((b_pad, hid_pad), jnp.bfloat16)),
            grid=grid,
            in_specs=[x_spec, w1_spec, b1_spec, w2_spec, b2_spec],
            out_specs=(out_spec, e_spec),
            compiler_params=cparams,
            cost_estimate=cost,
        )(x_flat, w1_p, b1_p, w2_p, b2_p)
        return out_p[:B, :n_classes], e_p[:B, :hidden]

    out_p = pl.pallas_call(
        _mlp_kernel_logits,
        out_shape=jax.ShapeDtypeStruct((b_pad, cls_pad), jnp.float32),
        grid=grid,
        in_specs=[x_spec, w1_spec, b1_spec, w2_spec, b2_spec],
        out_specs=out_spec,
        compiler_params=cparams,
        cost_estimate=cost,
    )(x_flat, w1_p, b1_p, w2_p, b2_p)
    return out_p[:B, :n_classes]


# --------------------------------- demo ------------------------------------ #

def _init_params(key, n_classes):
    # Deterministic synthetic init matching nn.Linear shapes (out_features, in_features).
    k1, k2, k3, k4 = jax.random.split(key, 4)
    bound1 = 1.0 / jnp.sqrt(784.0)
    bound2 = 1.0 / jnp.sqrt(100.0)
    w1 = jax.random.uniform(k1, (100, 784), jnp.float32, -bound1, bound1)
    b1 = jax.random.uniform(k2, (100,), jnp.float32, -bound1, bound1)
    w2 = jax.random.uniform(k3, (n_classes, 100), jnp.float32, -bound2, bound2)
    b2 = jax.random.uniform(k4, (n_classes,), jnp.float32, -bound2, bound2)
    return w1, b1, w2, b2


if __name__ == "__main__":
    key = jax.random.PRNGKey(0)
    n_classes = 10
    batch = 2

    kx, kp = jax.random.split(key)
    x = jax.random.normal(kx, (batch, 1, 28, 28), jnp.float32)  # NCHW, 1*28*28 = 784
    w1, b1, w2, b2 = _init_params(kp, n_classes)

    # One-time param prep (hoists transpose / pad / bf16 cast out of the forward).
    w1_p, b1_p, w2_p, b2_p = prepare_params(w1, b1, w2, b2)

    out, e = mnist_net_forward(x, w1_p, b1_p, w2_p, b2_p,
                               hidden=100, n_classes=n_classes, use_linear=True)
    out = jax.block_until_ready(out)
    e = jax.block_until_ready(e)

    out_only = mnist_net_forward(x, w1_p, b1_p, w2_p, b2_p,
                                 hidden=100, n_classes=n_classes, use_linear=False)
    out_only = jax.block_until_ready(out_only)

    # Reference in plain f32 JAX (same math as the PyTorch forward).
    x_flat = x.reshape(batch, -1)
    e_ref = jax.nn.sigmoid(x_flat @ w1.T + b1)
    out_ref = e_ref @ w2.T + b2

    # bf16 weights/activations + approx reciprocal => loose-but-meaningful tolerances.
    assert out.shape == (batch, n_classes) and e.shape == (batch, 100)
    assert out_only.shape == (batch, n_classes)
    assert jnp.allclose(out, out_ref, atol=2e-2, rtol=1e-2), "output mismatch"
    assert jnp.allclose(e.astype(jnp.float32), e_ref, atol=1e-2, rtol=1e-2), "embedding mismatch"
    assert jnp.allclose(out_only, out, atol=1e-6), "use_linear variants disagree"

    print("KERNEL_OK")
</pallas_src>

<mosaic_0001>
module attributes {stable_mosaic.version = 11 : i64} {
  func.func @_mlp_kernel_fused(%arg0: i32, %arg1: memref<8x784xf32, #tpu.memory_space<vmem>>, %arg2: memref<784x128xbf16, #tpu.memory_space<vmem>>, %arg3: memref<1x128xf32, #tpu.memory_space<vmem>>, %arg4: memref<128x128xbf16, #tpu.memory_space<vmem>>, %arg5: memref<1x128xf32, #tpu.memory_space<vmem>>, %arg6: memref<8x128xf32, #tpu.memory_space<vmem>>, %arg7: memref<8x128xbf16, #tpu.memory_space<vmem>>) attributes {dimension_semantics = [#tpu.dimension_semantics<parallel>], iteration_bounds = array<i64: 1>, scalar_prefetch = 0 : i64, scratch_operands = 0 : i64, tpu.core_type = #tpu.core_type<tc>, window_params = [{transform_indices = @transform_0, window_bounds = array<i64: 8, 784>}, {pipeline_mode = #tpu.pipeline_mode<synchronous>, transform_indices = @transform_1, window_bounds = array<i64: 784, 128>}, {pipeline_mode = #tpu.pipeline_mode<synchronous>, transform_indices = @transform_2, window_bounds = array<i64: 1, 128>}, {pipeline_mode = #tpu.pipeline_mode<synchronous>, transform_indices = @transform_3, window_bounds = array<i64: 128, 128>}, {pipeline_mode = #tpu.pipeline_mode<synchronous>, transform_indices = @transform_4, window_bounds = array<i64: 1, 128>}, {transform_indices = @transform_5, window_bounds = array<i64: 8, 128>}, {transform_indices = @transform_6, window_bounds = array<i64: 8, 128>}]} {
    %c0 = arith.constant 0 : index
    %c0_0 = arith.constant 0 : index
    %0 = vector.load %arg1[%c0, %c0_0] : memref<8x784xf32, #tpu.memory_space<vmem>>, vector<8x784xf32>
    %1 = arith.truncf %0 : vector<8x784xf32> to vector<8x784xbf16>
    %c0_1 = arith.constant 0 : index
    %c0_2 = arith.constant 0 : index
    %2 = vector.load %arg2[%c0_1, %c0_2] : memref<784x128xbf16, #tpu.memory_space<vmem>>, vector<784x128xbf16>
    %cst = arith.constant dense<0.000000e+00> : vector<8x128xf32>
    %3 = tpu.matmul %1, %2, %cst {dimension_numbers = #tpu.dot_dimension_numbers<[1], [0], [0], [1], [0, 0, 1, 1], [], []>} : vector<8x784xbf16>, vector<784x128xbf16>, vector<8x128xf32> -> vector<8x128xf32>
    %c0_3 = arith.constant 0 : index
    %c0_4 = arith.constant 0 : index
    %4 = vector.load %arg3[%c0_3, %c0_4] : memref<1x128xf32, #tpu.memory_space<vmem>>, vector<1x128xf32>
    %5 = vector.broadcast %4 : vector<1x128xf32> to vector<8x128xf32>
    %6 = arith.addf %3, %5 : vector<8x128xf32>
    %cst_5 = arith.constant 0.000000e+00 : f32
    %7 = vector.broadcast %cst_5 : f32 to vector<8x128xf32>
    %8 = arith.subf %7, %6 : vector<8x128xf32>
    %9 = math.exp %8 : vector<8x128xf32>
    %cst_6 = arith.constant 1.000000e+00 : f32
    %10 = vector.broadcast %cst_6 : f32 to vector<8x128xf32>
    %11 = arith.addf %10, %9 : vector<8x128xf32>
    %12 = tpu.reciprocal %11 {approx = true} : vector<8x128xf32> -> vector<8x128xf32>
    %13 = arith.truncf %12 : vector<8x128xf32> to vector<8x128xbf16>
    %c0_7 = arith.constant 0 : index
    %c0_8 = arith.constant 0 : index
    %14 = vector.load %arg7[%c0_7, %c0_8] : memref<8x128xbf16, #tpu.memory_space<vmem>>, vector<8x128xbf16>
    tpu.vector_store %arg7[%c0_7, %c0_8], %13 {strides = array<i32>} : memref<8x128xbf16, #tpu.memory_space<vmem>>, vector<8x128xbf16>,
    %15 = arith.truncf %12 : vector<8x128xf32> to vector<8x128xbf16>
    %c0_9 = arith.constant 0 : index
    %c0_10 = arith.constant 0 : index
    %16 = vector.load %arg4[%c0_9, %c0_10] : memref<128x128xbf16, #tpu.memory_space<vmem>>, vector<128x128xbf16>
    %cst_11 = arith.constant dense<0.000000e+00> : vector<8x128xf32>
    %17 = tpu.matmul %15, %16, %cst_11 {dimension_numbers = #tpu.dot_dimension_numbers<[1], [0], [0], [1], [0, 0, 1, 1], [], []>} : vector<8x128xbf16>, vector<128x128xbf16>, vector<8x128xf32> -> vector<8x128xf32>
    %c0_12 = arith.constant 0 : index
    %c0_13 = arith.constant 0 : index
    %18 = vector.load %arg5[%c0_12, %c0_13] : memref<1x128xf32, #tpu.memory_space<vmem>>, vector<1x128xf32>
    %19 = vector.broadcast %18 : vector<1x128xf32> to vector<8x128xf32>
    %20 = arith.addf %17, %19 : vector<8x128xf32>
    %c0_14 = arith.constant 0 : index
    %c0_15 = arith.constant 0 : index
    %21 = vector.load %arg6[%c0_14, %c0_15] : memref<8x128xf32, #tpu.memory_space<vmem>>, vector<8x128xf32>
    tpu.vector_store %arg6[%c0_14, %c0_15], %20 {strides = array<i32>} : memref<8x128xf32, #tpu.memory_space<vmem>>, vector<8x128xf32>,
    return
  }
  func.func @transform_0(%arg0: i32) -> (i32, i32) {
    %c0_i32 = arith.constant 0 : i32
    %c0_i32_0 = arith.constant 0 : i32
    return %arg0, %c0_i32 : i32, i32
  }
  func.func @transform_1(%arg0: i32) -> (i32, i32) {
    %c0_i32 = arith.constant 0 : i32
    %c0_i32_0 = arith.constant 0 : i32
    %c0_i32_1 = arith.constant 0 : i32
    return %c0_i32, %c0_i32_0 : i32, i32
  }
  func.func @transform_2(%arg0: i32) -> (i32, i32) {
    %c0_i32 = arith.constant 0 : i32
    %c0_i32_0 = arith.constant 0 : i32
    %c0_i32_1 = arith.constant 0 : i32
    return %c0_i32, %c0_i32_0 : i32, i32
  }
  func.func @transform_3(%arg0: i32) -> (i32, i32) {
    %c0_i32 = arith.constant 0 : i32
    %c0_i32_0 = arith.constant 0 : i32
    %c0_i32_1 = arith.constant 0 : i32
    return %c0_i32, %c0_i32_0 : i32, i32
  }
  func.func @transform_4(%arg0: i32) -> (i32, i32) {
    %c0_i32 = arith.constant 0 : i32
    %c0_i32_0 = arith.constant 0 : i32
    %c0_i32_1 = arith.constant 0 : i32
    return %c0_i32, %c0_i32_0 : i32, i32
  }
  func.func @transform_5(%arg0: i32) -> (i32, i32) {
    %c0_i32 = arith.constant 0 : i32
    %c0_i32_0 = arith.constant 0 : i32
    return %arg0, %c0_i32 : i32, i32
  }
  func.func @transform_6(%arg0: i32) -> (i32, i32) {
    %c0_i32 = arith.constant 0 : i32
    %c0_i32_0 = arith.constant 0 : i32
    return %arg0, %c0_i32 : i32, i32
  }
}

</mosaic_0001>

<llo_original>
// kernel: mnist_net_forward.1
$region0: #{mnist_net_forward.1}
  #allocation0 [shape = 'u32[]', space=smem, size = 0x4, offset = 0x4, fixed_abs, tag = 'smem constant byte address 0x4 - core index']
  #allocation1 [shape = 'u32[144,128]{1,0:T(1,128)}', space=vmem, size = 0x12000, scoped, tag = 'internal scratch']
  %s0 = inlined_call_operand.vmem [shape: f32[8,784], index: 0, kind: input, shape index: {}]
  %s1 = inlined_call_operand.hbm [shape: bf16[784,128], index: 1, kind: input, shape index: {}]
  %s2 = inlined_call_operand.vmem [shape: f32[1,128], index: 2, kind: input, shape index: {}]
  %s3 = inlined_call_operand.vmem [shape: bf16[128,128], index: 3, kind: input, shape index: {}]
  %s4 = inlined_call_operand.vmem [shape: f32[1,128], index: 4, kind: input, shape index: {}]
  %s5 = inlined_call_operand.vmem [shape: f32[8,128], index: 5, kind: output, shape index: {0}]
  %s6 = inlined_call_operand.vmem [shape: bf16[8,128], index: 6, kind: output, shape index: {1}]
  %7 = xla_tuple %s5, %s6
  %s8 = sld [smem:[#allocation0]]
  $region42: #{mnist_net_forward.1} parent=0
    _
  %s10 = ssub.s32 1, %s8
  %s11 = scalar_select 0, %s10, %s8
  $region1: #{mnist_net_forward.1} parent=0
    #allocation2 [shape = 'u8[200704]{0}', space=vmem, size = 0x31000, scoped, tag = 'input window, operand 1, single buffered']
    #allocation3 [shape = 's32[1]{0}', space=sflag, size = 0x4, scoped, tag = 'scoped memory for mnist_net_forward.1']
    %12 = vsyncpa [#allocation3], 0
    // Predicated region
    $region2: #{mnist_net_forward.1} parent=1 // pred_check
      _
    $region3: #{mnist_net_forward.1} parent=1 // pred_check_branch
      %14 = sbr.rel (0) target = $region5
    $region4: #{mnist_net_forward.1} parent=1 // pred_region
      _
    $region5: #{mnist_net_forward.1} parent=1 // pred_fallthru
      _
    // Predicated region
    $region6: #{mnist_net_forward.1} parent=1 // pred_check
      _
    $region7: #{mnist_net_forward.1} parent=1 // pred_check_branch
      %16 = sbr.rel (0) target = $region9
    $region8: #{mnist_net_forward.1} parent=1 // pred_region
      %s18 = ssub.s32 6272, 6272
      %19 = vsyncadd [#allocation3], %s18
      %s20 = sshll.u32 [#allocation2], 4
      %s21 = int_to_ptr.vmem [resolvable:$true] %s20
      %26 = dma.hbm_to_vmem [thread:$0]  %s1, 6272, %s21, [#allocation3], 64, 64, 4
    $region9: #{mnist_net_forward.1} parent=1 // pred_fallthru
      _
    // Predicated region
    $region10: #{mnist_net_forward.1} parent=1 // pred_check
      _
    $region11: #{mnist_net_forward.1} parent=1 // pred_check_branch
      %28 = sbr.rel (0) target = $region13
    $region12: #{mnist_net_forward.1} parent=1 // pred_region
      _
    $region13: #{mnist_net_forward.1} parent=1 // pred_fallthru
      _
    // Predicated region
    $region14: #{mnist_net_forward.1} parent=1 // pred_check
      _
    $region15: #{mnist_net_forward.1} parent=1 // pred_check_branch
      %30 = sbr.rel (0) target = $region17
    $region16: #{mnist_net_forward.1} parent=1 // pred_region
      _
    $region17: #{mnist_net_forward.1} parent=1 // pred_fallthru
      _
    // Predicated region
    $region18: #{mnist_net_forward.1} parent=1 // pred_check
      _
    $region19: #{mnist_net_forward.1} parent=1 // pred_check_branch
      %32 = sbr.rel (0) target = $region21
    $region20: #{mnist_net_forward.1} parent=1 // pred_region
      _
    $region21: #{mnist_net_forward.1} parent=1 // pred_fallthru
      _
    // Predicated region
    $region22: #{mnist_net_forward.1} parent=1 // pred_check
      _
    $region23: #{mnist_net_forward.1} parent=1 // pred_check_branch
      %34 = sbr.rel (0) target = $region25
    $region24: #{mnist_net_forward.1} parent=1 // pred_region
      %35 = dma.done [#allocation3], 6272
    $region25: #{mnist_net_forward.1} parent=1 // pred_fallthru
      _
    %v37 = vld [vmem:[%s0] sm:$0xff]
    %v38 = vld [vmem:[%s0 + $0x8] sm:$0xff]
    %v39 = vld [vmem:[%s0 + $0x10] sm:$0xff]
    %v40 = vld [vmem:[%s0 + $0x18] sm:$0xff]
    %v41 = vld [vmem:[%s0 + $0x20] sm:$0xff]
    %v42 = vld [vmem:[%s0 + $0x28] sm:$0xff]
    %v43 = vld [vmem:[%s0 + $0x30] sm:$0xff]
    %v44 = vpack.c.bf16 %v37, %v37
    %v45 = vpack.c.bf16 %v38, %v38
    %v46 = vpack.c.bf16 %v39, %v39
    %v47 = vpack.c.bf16 %v40, %v40
    %v48 = vpack.c.bf16 %v41, %v41
    %v49 = vpack.c.bf16 %v42, %v42
    %v50 = vpack.c.bf16 %v43, %v43
    %v51 = vld [vmem:[#allocation2] sm:$0xf]
    %v52 = vld [vmem:[#allocation2 + $0x4] sm:$0xf]
    %v53 = vld [vmem:[#allocation2 + $0x8] sm:$0xf]
    %v54 = vld [vmem:[#allocation2 + $0xc] sm:$0xf]
    %v55 = vld [vmem:[#allocation2 + $0x10] sm:$0xf]
    %v56 = vld [vmem:[#allocation2 + $0x14] sm:$0xf]
    %v57 = vld [vmem:[#allocation2 + $0x18] sm:$0xf]
    %v58 = vld [vmem:[#allocation2 + $0x1c] sm:$0xf]
    %v59 = vld [vmem:[#allocation2 + $0x20] sm:$0xf]
    %v60 = vld [vmem:[#allocation2 + $0x24] sm:$0xf]
    %v61 = vld [vmem:[#allocation2 + $0x28] sm:$0xf]
    %v62 = vld [vmem:[#allocation2 + $0x2c] sm:$0xf]
    %v63 = vld [vmem:[#allocation2 + $0x30] sm:$0xf]
    %v64 = vld [vmem:[#allocation2 + $0x34] sm:$0xf]
    %v65 = vld [vmem:[#allocation2 + $0x38] sm:$0xf]
    %v66 = vld [vmem:[#allocation2 + $0x3c] sm:$0xf]
    %v67 = vld [vmem:[#allocation2 + $0x40] sm:$0xf]
    %v68 = vld [vmem:[#allocation2 + $0x44] sm:$0xf]
    %v69 = vld [vmem:[#allocation2 + $0x48] sm:$0xf]
    %v70 = vld [vmem:[#allocation2 + $0x4c] sm:$0xf]
    %v71 = vld [vmem:[#allocation2 + $0x50] sm:$0xf]
    %v72 = vld [vmem:[#allocation2 + $0x54] sm:$0xf]
    %v73 = vld [vmem:[#allocation2 + $0x58] sm:$0xf]
    %v74 = vld [vmem:[#allocation2 + $0x5c] sm:$0xf]
    %v75 = vld [vmem:[#allocation2 + $0x60] sm:$0xf]
    %v76 = vld [vmem:[#allocation2 + $0x64] sm:$0xf]
    %v77 = vld [vmem:[#allocation2 + $0x68] sm:$0xf]
    %v78 = vld [vmem:[#allocation2 + $0x6c] sm:$0xf]
    %v79 = vld [vmem:[#allocation2 + $0x70] sm:$0xf]
    %v80 = vld [vmem:[#allocation2 + $0x74] sm:$0xf]
    %v81 = vld [vmem:[#allocation2 + $0x78] sm:$0xf]
    %v82 = vld [vmem:[#allocation2 + $0x7c] sm:$0xf]
    %v83 = vld [vmem:[#allocation2 + $0x80] sm:$0xf]
    %v84 = vld [vmem:[#allocation2 + $0x84] sm:$0xf]
    %v85 = vld [vmem:[#allocation2 + $0x88] sm:$0xf]
    %v86 = vld [vmem:[#allocation2 + $0x8c] sm:$0xf]
    %v87 = vld [vmem:[#allocation2 + $0x90] sm:$0xf]
    %v88 = vld [vmem:[#allocation2 + $0x94] sm:$0xf]
    %v89 = vld [vmem:[#allocation2 + $0x98] sm:$0xf]
    %v90 = vld [vmem:[#allocation2 + $0x9c] sm:$0xf]
    %v91 = vld [vmem:[#allocation2 + $0xa0] sm:$0xf]
    %v92 = vld [vmem:[#allocation2 + $0xa4] sm:$0xf]
    %v93 = vld [vmem:[#allocation2 + $0xa8] sm:$0xf]
    %v94 = vld [vmem:[#allocation2 + $0xac] sm:$0xf]
    %v95 = vld [vmem:[#allocation2 + $0xb0] sm:$0xf]
    %v96 = vld [vmem:[#allocation2 + $0xb4] sm:$0xf]
    %v97 = vld [vmem:[#allocation2 + $0xb8] sm:$0xf]
    %v98 = vld [vmem:[#allocation2 + $0xbc] sm:$0xf]
    %v99 = vld [vmem:[#allocation2 + $0xc0] sm:$0xf]
    %v100 = vld [vmem:[#allocation2 + $0xc4] sm:$0xf]
    %v101 = vld [vmem:[#allocation2 + $0xc8] sm:$0xf]
    %v102 = vld [vmem:[#allocation2 + $0xcc] sm:$0xf]
    %v103 = vld [vmem:[#allocation2 + $0xd0] sm:$0xf]
    %v104 = vld [vmem:[#allocation2 + $0xd4] sm:$0xf]
    %v105 = vld [vmem:[#allocation2 + $0xd8] sm:$0xf]
    %v106 = vld [vmem:[#allocation2 + $0xdc] sm:$0xf]
    %v107 = vld [vmem:[#allocation2 + $0xe0] sm:$0xf]
    %v108 = vld [vmem:[#allocation2 + $0xe4] sm:$0xf]
    %v109 = vld [vmem:[#allocation2 + $0xe8] sm:$0xf]
    %v110 = vld [vmem:[#allocation2 + $0xec] sm:$0xf]
    %v111 = vld [vmem:[#allocation2 + $0xf0] sm:$0xf]
    %v112 = vld [vmem:[#allocation2 + $0xf4] sm:$0xf]
    %v113 = vld [vmem:[#allocation2 + $0xf8] sm:$0xf]
    %v114 = vld [vmem:[#allocation2 + $0xfc] sm:$0xf]
    %v115 = vld [vmem:[#allocation2 + $0x100] sm:$0xf]
    %v116 = vld [vmem:[#allocation2 + $0x104] sm:$0xf]
    %v117 = vld [vmem:[#allocation2 + $0x108] sm:$0xf]
    %v118 = vld [vmem:[#allocation2 + $0x10c] sm:$0xf]
    %v119 = vld [vmem:[#allocation2 + $0x110] sm:$0xf]
    %v120 = vld [vmem:[#allocation2 + $0x114] sm:$0xf]
    %v121 = vld [vmem:[#allocation2 + $0x118] sm:$0xf]
    %v122 = vld [vmem:[#allocation2 + $0x11c] sm:$0xf]
    %v123 = vld [vmem:[#allocation2 + $0x120] sm:$0xf]
    %v124 = vld [vmem:[#allocation2 + $0x124] sm:$0xf]
    %v125 = vld [vmem:[#allocation2 + $0x128] sm:$0xf]
    %v126 = vld [vmem:[#allocation2 + $0x12c] sm:$0xf]
    %v127 = vld [vmem:[#allocation2 + $0x130] sm:$0xf]
    %v128 = vld [vmem:[#allocation2 + $0x134] sm:$0xf]
    %v129 = vld [vmem:[#allocation2 + $0x138] sm:$0xf]
    %v130 = vld [vmem:[#allocation2 + $0x13c] sm:$0xf]
    %v131 = vld [vmem:[#allocation2 + $0x140] sm:$0xf]
    %v132 = vld [vmem:[#allocation2 + $0x144] sm:$0xf]
    %v133 = vld [vmem:[#allocation2 + $0x148] sm:$0xf]
    %v134 = vld [vmem:[#allocation2 + $0x14c] sm:$0xf]
    %v135 = vld [vmem:[#allocation2 + $0x150] sm:$0xf]
    %v136 = vld [vmem:[#allocation2 + $0x154] sm:$0xf]
    %v137 = vld [vmem:[#allocation2 + $0x158] sm:$0xf]
    %v138 = vld [vmem:[#allocation2 + $0x15c] sm:$0xf]
    %v139 = vld [vmem:[#allocation2 + $0x160] sm:$0xf]
    %v140 = vld [vmem:[#allocation2 + $0x164] sm:$0xf]
    %v141 = vld [vmem:[#allocation2 + $0x168] sm:$0xf]
    %v142 = vld [vmem:[#allocation2 + $0x16c] sm:$0xf]
    %v143 = vld [vmem:[#allocation2 + $0x170] sm:$0xf]
    %v144 = vld [vmem:[#allocation2 + $0x174] sm:$0xf]
    %v145 = vld [vmem:[#allocation2 + $0x178] sm:$0xf]
    %v146 = vld [vmem:[#allocation2 + $0x17c] sm:$0xf]
    %v147 = vld [vmem:[#allocation2 + $0x180] sm:$0xf]
    %v148 = vld [vmem:[#allocation2 + $0x184] sm:$0xf]
    %v149 = vld [vmem:[%s2] sm:$0x1]
    %v151 = vlaneseq
    %v152 = vshrl.u32 %v151, 7
    %v153 = vsub.s32 0, %v152
    %v154 = vrot.slane %v149, %v153
    %v254 = vunpack.c.l.b16 %v51
    %v255 = vunpack.c.l.b16 %v52
    %v256 = vunpack.c.l.b16 %v53
    %v257 = vunpack.c.l.b16 %v54
    %v258 = vunpack.c.l.b16 %v55
    %v259 = vunpack.c.l.b16 %v56
    %v260 = vunpack.c.l.b16 %v57
    %v261 = vunpack.c.l.b16 %v58
    %v262 = vunpack.c.l.b16 %v59
    %v263 = vunpack.c.l.b16 %v60
    %v264 = vunpack.c.l.b16 %v61
    %v265 = vunpack.c.l.b16 %v62
    %v266 = vunpack.c.l.b16 %v63
    %v267 = vunpack.c.l.b16 %v64
    %v268 = vunpack.c.l.b16 %v65
    %v269 = vunpack.c.l.b16 %v66
    %v270 = vunpack.c.l.b16 %v67
    %v271 = vunpack.c.l.b16 %v68
    %v272 = vunpack.c.l.b16 %v69
    %v273 = vunpack.c.l.b16 %v70
    %v274 = vunpack.c.l.b16 %v71
    %v275 = vunpack.c.l.b16 %v72
    %v276 = vunpack.c.l.b16 %v73
    %v277 = vunpack.c.l.b16 %v74
    %v278 = vunpack.c.l.b16 %v75
    %v279 = vunpack.c.l.b16 %v76
    %v280 = vunpack.c.l.b16 %v77
    %v281 = vunpack.c.l.b16 %v78
    %v282 = vunpack.c.l.b16 %v79
    %v283 = vunpack.c.l.b16 %v80
    %v284 = vunpack.c.l.b16 %v81
    %v285 = vunpack.c.l.b16 %v82
    %v286 = vunpack.c.l.b16 %v83
    %v287 = vunpack.c.l.b16 %v84
    %v288 = vunpack.c.l.b16 %v85
    %v289 = vunpack.c.l.b16 %v86
    %v290 = vunpack.c.l.b16 %v87
    %v291 = vunpack.c.l.b16 %v88
    %v292 = vunpack.c.l.b16 %v89
    %v293 = vunpack.c.l.b16 %v90
    %v294 = vunpack.c.l.b16 %v91
    %v295 = vunpack.c.l.b16 %v92
    %v296 = vunpack.c.l.b16 %v93
    %v297 = vunpack.c.l.b16 %v94
    %v298 = vunpack.c.l.b16 %v95
    %v299 = vunpack.c.l.b16 %v96
    %v300 = vunpack.c.l.b16 %v97
    %v301 = vunpack.c.l.b16 %v98
    %v302 = vunpack.c.l.b16 %v99
    %v303 = vunpack.c.l.b16 %v100
    %v304 = vunpack.c.l.b16 %v101
    %v305 = vunpack.c.l.b16 %v102
    %v306 = vunpack.c.l.b16 %v103
    %v307 = vunpack.c.l.b16 %v104
    %v308 = vunpack.c.l.b16 %v105
    %v309 = vunpack.c.l.b16 %v106
    %v310 = vunpack.c.l.b16 %v107
    %v311 = vunpack.c.l.b16 %v108
    %v312 = vunpack.c.l.b16 %v109
    %v313 = vunpack.c.l.b16 %v110
    %v314 = vunpack.c.l.b16 %v111
    %v315 = vunpack.c.l.b16 %v112
    %v316 = vunpack.c.l.b16 %v113
    %v317 = vunpack.c.l.b16 %v114
    %v318 = vunpack.c.l.b16 %v115
    %v319 = vunpack.c.l.b16 %v116
    %v320 = vunpack.c.l.b16 %v117
    %v321 = vunpack.c.l.b16 %v118
    %v322 = vunpack.c.l.b16 %v119
    %v323 = vunpack.c.l.b16 %v120
    %v324 = vunpack.c.l.b16 %v121
    %v325 = vunpack.c.l.b16 %v122
    %v326 = vunpack.c.l.b16 %v123
    %v327 = vunpack.c.l.b16 %v124
    %v328 = vunpack.c.l.b16 %v125
    %v329 = vunpack.c.l.b16 %v126
    %v330 = vunpack.c.l.b16 %v127
    %v331 = vunpack.c.l.b16 %v128
    %v332 = vunpack.c.l.b16 %v129
    %v333 = vunpack.c.l.b16 %v130
    %v334 = vunpack.c.l.b16 %v131
    %v335 = vunpack.c.l.b16 %v132
    %v336 = vunpack.c.l.b16 %v133
    %v337 = vunpack.c.l.b16 %v134
    %v338 = vunpack.c.l.b16 %v135
    %v339 = vunpack.c.l.b16 %v136
    %v340 = vunpack.c.l.b16 %v137
    %v341 = vunpack.c.l.b16 %v138
    %v342 = vunpack.c.l.b16 %v139
    %v343 = vunpack.c.l.b16 %v140
    %v344 = vunpack.c.l.b16 %v141
    %v345 = vunpack.c.l.b16 %v142
    %v346 = vunpack.c.l.b16 %v143
    %v347 = vunpack.c.l.b16 %v144
    %v348 = vunpack.c.l.b16 %v145
    %v349 = vunpack.c.l.b16 %v146
    %v350 = vunpack.c.l.b16 %v147
    %v351 = vunpack.c.l.b16 %v148
    %v352 = vpack.c.b16 %v255, %v254
    %v353 = vpack.c.b16 %v257, %v256
    %v354 = vpack.c.b16 %v259, %v258
    %v355 = vpack.c.b16 %v261, %v260
    %v356 = vpack.c.b16 %v263, %v262
    %v357 = vpack.c.b16 %v265, %v264
    %v358 = vpack.c.b16 %v267, %v266
    %v359 = vpack.c.b16 %v269, %v268
    %v360 = vpack.c.b16 %v271, %v270
    %v361 = vpack.c.b16 %v273, %v272
    %v362 = vpack.c.b16 %v275, %v274
    %v363 = vpack.c.b16 %v277, %v276
    %v364 = vpack.c.b16 %v279, %v278
    %v365 = vpack.c.b16 %v281, %v280
    %v366 = vpack.c.b16 %v283, %v282
    %v367 = vpack.c.b16 %v285, %v284
    %v368 = vpack.c.b16 %v287, %v286
    %v369 = vpack.c.b16 %v289, %v288
    %v370 = vpack.c.b16 %v291, %v290
    %v371 = vpack.c.b16 %v293, %v292
    %v372 = vpack.c.b16 %v295, %v294
    %v373 = vpack.c.b16 %v297, %v296
    %v374 = vpack.c.b16 %v299, %v298
    %v375 = vpack.c.b16 %v301, %v300
    %v376 = vpack.c.b16 %v303, %v302
    %v377 = vpack.c.b16 %v305, %v304
    %v378 = vpack.c.b16 %v307, %v306
    %v379 = vpack.c.b16 %v309, %v308
    %v380 = vpack.c.b16 %v311, %v310
    %v381 = vpack.c.b16 %v313, %v312
    %v382 = vpack.c.b16 %v315, %v314
    %v383 = vpack.c.b16 %v317, %v316
    %v384 = vpack.c.b16 %v319, %v318
    %v385 = vpack.c.b16 %v321, %v320
    %v386 = vpack.c.b16 %v323, %v322
    %v387 = vpack.c.b16 %v325, %v324
    %v388 = vpack.c.b16 %v327, %v326
    %v389 = vpack.c.b16 %v329, %v328
    %v390 = vpack.c.b16 %v331, %v330
    %v391 = vpack.c.b16 %v333, %v332
    %v392 = vpack.c.b16 %v335, %v334
    %v393 = vpack.c.b16 %v337, %v336
    %v394 = vpack.c.b16 %v339, %v338
    %v395 = vpack.c.b16 %v341, %v340
    %v396 = vpack.c.b16 %v343, %v342
    %v397 = vpack.c.b16 %v345, %v344
    %v398 = vpack.c.b16 %v347, %v346
    %v399 = vpack.c.b16 %v349, %v348
    %v400 = vpack.c.b16 %v351, %v350
    %vm450 = vcmask 130048
    %v452 = vsel %vm450, %v50, 0
    %454 = vmatprep.subr.bf16.mxu0 0
    %455 = vmatpush1.bf16.msra.mxu0 %v352
    %456 = vmatprep.subr.bf16.mxu0 0
    %457 = vmatpush1.bf16.msra.mxu0 %v353
    %458 = vmatprep.subr.bf16.mxu0 0
    %459 = vmatpush1.bf16.msra.mxu0 %v354
    %460 = vmatprep.subr.bf16.mxu0 0
    %461 = vmatpush1.bf16.msra.mxu0 %v355
    %462 = vmatprep.subr.bf16.mxu0 0
    %463 = vmatpush1.bf16.msra.mxu0 %v356
    %464 = vmatprep.subr.bf16.mxu0 0
    %465 = vmatpush1.bf16.msra.mxu0 %v357
    %466 = vmatprep.subr.bf16.mxu0 0
    %467 = vmatpush1.bf16.msra.mxu0 %v358
    %468 = vmatprep.subr.bf16.mxu0 0
    %469 = vmatpush1.bf16.msra.mxu0 %v359
    %470 = vmatprep.subr.bf16.mxu0 0
    %471 = vmatpush1.bf16.msra.mxu0 %v360
    %472 = vmatprep.subr.bf16.mxu0 0
    %473 = vmatpush1.bf16.msra.mxu0 %v361
    %474 = vmatprep.subr.bf16.mxu0 0
    %475 = vmatpush1.bf16.msra.mxu0 %v362
    %476 = vmatprep.subr.bf16.mxu0 0
    %477 = vmatpush1.bf16.msra.mxu0 %v363
    %478 = vmatprep.subr.bf16.mxu0 0
    %479 = vmatpush1.bf16.msra.mxu0 %v364
    %480 = vmatprep.subr.bf16.mxu0 0
    %481 = vmatpush1.bf16.msra.mxu0 %v365
    %482 = vmatprep.subr.bf16.mxu0 0
    %483 = vmatpush1.bf16.msra.mxu0 %v366
    %484 = vmatprep.subr.bf16.mxu0 0
    %485 = vmatpush1.bf16.msra.mxu0 %v367
    %486 = vmatprep.mubr.bf16.mxu0 %v45
    %487 = vmatmul.mubr.bf16.gmra.mrb[0].mxu0 %v44
    %v488 = vpop.f32.mrb[0].mxu0
    %v489 = vadd.f32 %v154, %v488
    %v490 = vpop.f32.mrb[0].mxu0
    %v491 = vpop.f32.mrb[0].mxu0
    %v492 = vpop.f32.mrb[0].mxu0
    %493 = vdwg.mxu0
    %494 = vmatprep.subr.bf16.mxu0 0
    %495 = vmatpush1.bf16.msra.mxu0 %v368
    %496 = vmatprep.subr.bf16.mxu0 0
    %497 = vmatpush1.bf16.msra.mxu0 %v369
    %498 = vmatprep.subr.bf16.mxu0 0
    %499 = vmatpush1.bf16.msra.mxu0 %v370
    %500 = vmatprep.subr.bf16.mxu0 0
    %501 = vmatpush1.bf16.msra.mxu0 %v371
    %502 = vmatprep.subr.bf16.mxu0 0
    %503 = vmatpush1.bf16.msra.mxu0 %v372
    %504 = vmatprep.subr.bf16.mxu0 0
    %505 = vmatpush1.bf16.msra.mxu0 %v373
    %506 = vmatprep.subr.bf16.mxu0 0
    %507 = vmatpush1.bf16.msra.mxu0 %v374
    %508 = vmatprep.subr.bf16.mxu0 0
    %509 = vmatpush1.bf16.msra.mxu0 %v375
    %510 = vmatprep.subr.bf16.mxu0 0
    %511 = vmatpush1.bf16.msra.mxu0 %v376
    %512 = vmatprep.subr.bf16.mxu0 0
    %513 = vmatpush1.bf16.msra.mxu0 %v377
    %514 = vmatprep.subr.bf16.mxu0 0
    %515 = vmatpush1.bf16.msra.mxu0 %v378
    %516 = vmatprep.subr.bf16.mxu0 0
    %517 = vmatpush1.bf16.msra.mxu0 %v379
    %518 = vmatprep.subr.bf16.mxu0 0
    %519 = vmatpush1.bf16.msra.mxu0 %v380
    %520 = vmatprep.subr.bf16.mxu0 0
    %521 = vmatpush1.bf16.msra.mxu0 %v381
    %522 = vmatprep.subr.bf16.mxu0 0
    %523 = vmatpush1.bf16.msra.mxu0 %v382
    %524 = vmatprep.subr.bf16.mxu0 0
    %525 = vmatpush1.bf16.msra.mxu0 %v383
    %526 = vmatprep.mubr.bf16.mxu0 %v47
    %527 = vmatmul.mubr.bf16.gmra.mrb[0].mxu0 %v46
    %v528 = vpop.f32.mrb[0].mxu0
    %v529 = vadd.f32 %v489, %v528
    %v530 = vpop.f32.mrb[0].mxu0
    %v531 = vpop.f32.mrb[0].mxu0
    %v532 = vpop.f32.mrb[0].mxu0
    %533 = vdwg.mxu0
    %534 = vmatprep.subr.bf16.mxu0 0
    %535 = vmatpush1.bf16.msra.mxu0 %v384
    %536 = vmatprep.subr.bf16.mxu0 0
    %537 = vmatpush1.bf16.msra.mxu0 %v385
    %538 = vmatprep.subr.bf16.mxu0 0
    %539 = vmatpush1.bf16.msra.mxu0 %v386
    %540 = vmatprep.subr.bf16.mxu0 0
    %541 = vmatpush1.bf16.msra.mxu0 %v387
    %542 = vmatprep.subr.bf16.mxu0 0
    %543 = vmatpush1.bf16.msra.mxu0 %v388
    %544 = vmatprep.subr.bf16.mxu0 0
    %545 = vmatpush1.bf16.msra.mxu0 %v389
    %546 = vmatprep.subr.bf16.mxu0 0
    %547 = vmatpush1.bf16.msra.mxu0 %v390
    %548 = vmatprep.subr.bf16.mxu0 0
    %549 = vmatpush1.bf16.msra.mxu0 %v391
    %550 = vmatprep.subr.bf16.mxu0 0
    %551 = vmatpush1.bf16.msra.mxu0 %v392
    %552 = vmatprep.subr.bf16.mxu0 0
    %553 = vmatpush1.bf16.msra.mxu0 %v393
    %554 = vmatprep.subr.bf16.mxu0 0
    %555 = vmatpush1.bf16.msra.mxu0 %v394
    %556 = vmatprep.subr.bf16.mxu0 0
    %557 = vmatpush1.bf16.msra.mxu0 %v395
    %558 = vmatprep.subr.bf16.mxu0 0
    %559 = vmatpush1.bf16.msra.mxu0 %v396
    %560 = vmatprep.subr.bf16.mxu0 0
    %561 = vmatpush1.bf16.msra.mxu0 %v397
    %562 = vmatprep.subr.bf16.mxu0 0
    %563 = vmatpush1.bf16.msra.mxu0 %v398
    %564 = vmatprep.subr.bf16.mxu0 0
    %565 = vmatpush1.bf16.msra.mxu0 %v399
    %566 = vmatprep.mubr.bf16.mxu0 %v49
    %567 = vmatmul.mubr.bf16.gmra.mrb[0].mxu0 %v48
    %v568 = vpop.f32.mrb[0].mxu0
    %v569 = vadd.f32 %v529, %v568
    %v570 = vpop.f32.mrb[0].mxu0
    %v571 = vpop.f32.mrb[0].mxu0
    %v572 = vpop.f32.mrb[0].mxu0
    %573 = vdwg.mxu0
    %574 = vmatprep.subr.bf16.mxu0 0
    %575 = vmatpush1.bf16.msra.mxu0 %v400
    %576 = vmatprep.subr.bf16.mxu0 0
    %577 = vmatpush1.bf16.msra.mxu0 0
    %578 = vmatprep.subr.bf16.mxu0 0
    %579 = vmatpush1.bf16.msra.mxu0 0
    %580 = vmatprep.subr.bf16.mxu0 0
    %581 = vmatpush1.bf16.msra.mxu0 0
    %582 = vmatprep.subr.bf16.mxu0 0
    %583 = vmatpush1.bf16.msra.mxu0 0
    %584 = vmatprep.subr.bf16.mxu0 0
    %585 = vmatpush1.bf16.msra.mxu0 0
    %586 = vmatprep.subr.bf16.mxu0 0
    %587 = vmatpush1.bf16.msra.mxu0 0
    %588 = vmatprep.subr.bf16.mxu0 0
    %589 = vmatpush1.bf16.msra.mxu0 0
    %590 = vmatprep.subr.bf16.mxu0 0
    %591 = vmatpush1.bf16.msra.mxu0 0
    %592 = vmatprep.subr.bf16.mxu0 0
    %593 = vmatpush1.bf16.msra.mxu0 0
    %594 = vmatprep.subr.bf16.mxu0 0
    %595 = vmatpush1.bf16.msra.mxu0 0
    %596 = vmatprep.subr.bf16.mxu0 0
    %597 = vmatpush1.bf16.msra.mxu0 0
    %598 = vmatprep.subr.bf16.mxu0 0
    %599 = vmatpush1.bf16.msra.mxu0 0
    %600 = vmatprep.subr.bf16.mxu0 0
    %601 = vmatpush1.bf16.msra.mxu0 0
    %602 = vmatprep.subr.bf16.mxu0 0
    %603 = vmatpush1.bf16.msra.mxu0 0
    %604 = vmatprep.subr.bf16.mxu0 0
    %605 = vmatpush1.bf16.msra.mxu0 0
    %606 = vmatprep.mubr.bf16.mxu0 0
    %607 = vmatmul.mubr.bf16.gmra.mrb[0].mxu0 %v452
    %v608 = vpop.f32.mrb[0].mxu0
    %v609 = vadd.f32 %v569, %v608
    %v610 = vpop.f32.mrb[0].mxu0
    %v611 = vpop.f32.mrb[0].mxu0
    %v612 = vpop.f32.mrb[0].mxu0
    %613 = vdwg.mxu0
    %v614 = vsub.f32 0.0, %v609
    %v615 = vmul.f32 %v614, 1.442695
    %v616 = vpow.pop %v615
    %v617 = vadd.f32 %v616, 1.0
    %v618 = vrcp.pop %v617
    %v619 = vpack.c.bf16 %v618, %v618
    %620 = vst [vmem:[%s6] sm:$0xf] %v619
    %v621 = vld [vmem:[%s3] sm:$0xf]
    %v622 = vld [vmem:[%s3 + $0x4] sm:$0xf]
    %v623 = vld [vmem:[%s3 + $0x8] sm:$0xf]
    %v624 = vld [vmem:[%s3 + $0xc] sm:$0xf]
    %v625 = vld [vmem:[%s3 + $0x10] sm:$0xf]
    %v626 = vld [vmem:[%s3 + $0x14] sm:$0xf]
    %v627 = vld [vmem:[%s3 + $0x18] sm:$0xf]
    %v628 = vld [vmem:[%s3 + $0x1c] sm:$0xf]
    %v629 = vld [vmem:[%s3 + $0x20] sm:$0xf]
    %v630 = vld [vmem:[%s3 + $0x24] sm:$0xf]
    %v631 = vld [vmem:[%s3 + $0x28] sm:$0xf]
    %v632 = vld [vmem:[%s3 + $0x2c] sm:$0xf]
    %v633 = vld [vmem:[%s3 + $0x30] sm:$0xf]
    %v634 = vld [vmem:[%s3 + $0x34] sm:$0xf]
    %v635 = vld [vmem:[%s3 + $0x38] sm:$0xf]
    %v636 = vld [vmem:[%s3 + $0x3c] sm:$0xf]
    %v637 = vld [vmem:[%s4] sm:$0x1]
    %v639 = vlaneseq
    %v640 = vshrl.u32 %v639, 7
    %v641 = vsub.s32 0, %v640
    %v642 = vrot.slane %v637, %v641
    %v660 = vunpack.c.l.b16 %v621
    %v661 = vunpack.c.l.b16 %v622
    %v662 = vunpack.c.l.b16 %v623
    %v663 = vunpack.c.l.b16 %v624
    %v664 = vunpack.c.l.b16 %v625
    %v665 = vunpack.c.l.b16 %v626
    %v666 = vunpack.c.l.b16 %v627
    %v667 = vunpack.c.l.b16 %v628
    %v668 = vunpack.c.l.b16 %v629
    %v669 = vunpack.c.l.b16 %v630
    %v670 = vunpack.c.l.b16 %v631
    %v671 = vunpack.c.l.b16 %v632
    %v672 = vunpack.c.l.b16 %v633
    %v673 = vunpack.c.l.b16 %v634
    %v674 = vunpack.c.l.b16 %v635
    %v675 = vunpack.c.l.b16 %v636
    %v676 = vpack.c.b16 %v661, %v660
    %v677 = vpack.c.b16 %v663, %v662
    %v678 = vpack.c.b16 %v665, %v664
    %v679 = vpack.c.b16 %v667, %v666
    %v680 = vpack.c.b16 %v669, %v668
    %v681 = vpack.c.b16 %v671, %v670
    %v682 = vpack.c.b16 %v673, %v672
    %v683 = vpack.c.b16 %v675, %v674
    %692 = vmatprep.subr.bf16.mxu0 0
    %693 = vmatpush1.bf16.msra.mxu0 %v676
    %694 = vmatprep.subr.bf16.mxu0 0
    %695 = vmatpush1.bf16.msra.mxu0 %v677
    %696 = vmatprep.subr.bf16.mxu0 0
    %697 = vmatpush1.bf16.msra.mxu0 %v678
    %698 = vmatprep.subr.bf16.mxu0 0
    %699 = vmatpush1.bf16.msra.mxu0 %v679
    %700 = vmatprep.subr.bf16.mxu0 0
    %701 = vmatpush1.bf16.msra.mxu0 %v680
    %702 = vmatprep.subr.bf16.mxu0 0
    %703 = vmatpush1.bf16.msra.mxu0 %v681
    %704 = vmatprep.subr.bf16.mxu0 0
    %705 = vmatpush1.bf16.msra.mxu0 %v682
    %706 = vmatprep.subr.bf16.mxu0 0
    %707 = vmatpush1.bf16.msra.mxu0 %v683
    %708 = vmatprep.subr.bf16.mxu0 0
    %709 = vmatpush1.bf16.msra.mxu0 0
    %710 = vmatprep.subr.bf16.mxu0 0
    %711 = vmatpush1.bf16.msra.mxu0 0
    %712 = vmatprep.subr.bf16.mxu0 0
    %713 = vmatpush1.bf16.msra.mxu0 0
    %714 = vmatprep.subr.bf16.mxu0 0
    %715 = vmatpush1.bf16.msra.mxu0 0
    %716 = vmatprep.subr.bf16.mxu0 0
    %717 = vmatpush1.bf16.msra.mxu0 0
    %718 = vmatprep.subr.bf16.mxu0 0
    %719 = vmatpush1.bf16.msra.mxu0 0
    %720 = vmatprep.subr.bf16.mxu0 0
    %721 = vmatpush1.bf16.msra.mxu0 0
    %722 = vmatprep.subr.bf16.mxu0 0
    %723 = vmatpush1.bf16.msra.mxu0 0
    %724 = vmatprep.mubr.bf16.mxu0 0
    %725 = vmatmul.mubr.bf16.gmra.mrb[0].mxu0 %v619
    %v726 = vpop.f32.mrb[0].mxu0
    %v727 = vadd.f32 %v642, %v726
    %v728 = vpop.f32.mrb[0].mxu0
    %v729 = vpop.f32.mrb[0].mxu0
    %v730 = vpop.f32.mrb[0].mxu0
    %731 = vdwg.mxu0
    %732 = vst [vmem:[%s5] sm:$0xff] %v727
    // Predicated region
    $region26: #{mnist_net_forward.1} parent=1 // pred_check
      _
    $region27: #{mnist_net_forward.1} parent=1 // pred_check_branch
      %734 = sbr.rel (0) target = $region29
    $region28: #{mnist_net_forward.1} parent=1 // pred_region
      _
    $region29: #{mnist_net_forward.1} parent=1 // pred_fallthru
      _
    // Predicated region
    $region30: #{mnist_net_forward.1} parent=1 // pred_check
      _
    $region31: #{mnist_net_forward.1} parent=1 // pred_check_branch
      %736 = sbr.rel (0) target = $region33
    $region32: #{mnist_net_forward.1} parent=1 // pred_region
      _
    $region33: #{mnist_net_forward.1} parent=1 // pred_fallthru
      _
    // Predicated region
    $region34: #{mnist_net_forward.1} parent=1 // pred_check
      _
    $region35: #{mnist_net_forward.1} parent=1 // pred_check_branch
      %738 = sbr.rel (0) target = $region37
    $region36: #{mnist_net_forward.1} parent=1 // pred_region
      _
    $region37: #{mnist_net_forward.1} parent=1 // pred_fallthru
      _
    // Predicated region
    $region38: #{mnist_net_forward.1} parent=1 // pred_check
      _
    $region39: #{mnist_net_forward.1} parent=1 // pred_check_branch
      %740 = sbr.rel (0) target = $region41
    $region40: #{mnist_net_forward.1} parent=1 // pred_region
      _
    $region41: #{mnist_net_forward.1} parent=1 // pred_fallthru
      _
    %741 = vsyncpa [#allocation3], 1

</llo_original>
